<compile_context>
chip_gen: v7x
topology: tpu7x:2x2x1
jax: 0.10.0
libtpu: 0.0.40
codegen_flags: <defaults>
</compile_context>

<pallas_src>
import numpy as np
import jax
import jax.numpy as jnp
from jax.experimental import pallas as pl
from jax.experimental.pallas import tpu as pltpu

NUM_ANCHORS = 3
NUM_CLASSES = 4
ATTRS = 5 + NUM_CLASSES          # per-anchor channels: [p, x, y, w, h, cls...]
COUT = NUM_ANCHORS * ATTRS       # detection-head conv output channels (27)
SUB = 32                         # head channels padded to a sublane multiple of 8
SCALES = ((13, 32), (26, 16), (52, 8))


def _round_up(x, m):
    return (x + m - 1) // m * m


def make_head_decode_kernel(TM):
    """Fused 1x1-conv head (MXU) + YOLO decode for one (32, TM) output tile.

    Output sublane layout, per anchor a (base b = 9*a):
      b+0: raw objectness logit p        b+1: cx = (w_idx + x) * stride / case
      b+2: cy = (h_idx + y) * s/c        b+3: w  = anchor_w * exp(w) / case
      b+4: h  = anchor_h * exp(h) / c    b+5: sigmoid(p)   (class rows reused)
      b+6: argmax(class logits)          b+7, b+8, 27..31: unused.
    """

    def kernel(sid_ref, feat_ref, idx_ref, w_ref, c_ref, out_ref):
        del sid_ref                                    # only used by the index_maps
        # 1x1 conv as a transposed MXU matmul: (32, Cin) @ (Cin, TM) -> (32, TM) f32.
        y = jnp.dot(w_ref[...], feat_ref[...], preferred_element_type=jnp.float32)

        bias = c_ref[:, 0:1]                           # (32, 1) per-scale constants
        mul_aff = c_ref[:, 1:2]                        # 1 at p rows, stride/case at x/y rows
        exp_mul = c_ref[:, 2:3]                        # anchor/case at w/h rows
        mask_x = c_ref[:, 3:4]                         # 1 at x rows
        mask_y = c_ref[:, 4:5]                         # 1 at y rows
        y = y + bias

        w_idx = idx_ref[0:1, :]                        # (1, TM) exact grid-cell column
        h_idx = idx_ref[1:2, :]                        # (1, TM) exact grid-cell row

        # Structural sublane masks (cheap (32, 1) iota compares).
        sub = jax.lax.broadcasted_iota(jnp.int32, (SUB, 1), 0)
        is_p = sub < 0
        is_exp = sub < 0
        for a in range(NUM_ANCHORS):
            b = a * ATTRS
            is_p = is_p | (sub == b)
            is_exp = is_exp | (sub == b + 3) | (sub == b + 4)

        # One full-width exp serves both box w/h (exp(y)) and sigmoid (exp(-p)).
        E = jnp.exp(jnp.where(is_p, -y, y))
        affine = (y + w_idx * mask_x + h_idx * mask_y) * mul_aff
        dec = jnp.where(is_exp, E * exp_mul, affine)

        # Per-anchor sigmoid(objectness) and class argmax written into spare rows.
        for a in range(NUM_ANCHORS):
            b = a * ATTRS
            sig = 1.0 / (1.0 + E[b:b + 1, :])                      # = sigmoid(p)
            dec = jnp.where(sub == b + 5, sig, dec)
            crows = [y[b + 5 + c:b + 6 + c, :] for c in range(NUM_CLASSES)]
            cmax = crows[0]
            for c in range(1, NUM_CLASSES):
                cmax = jnp.maximum(cmax, crows[c])
            cidx = jnp.full((1, TM), float(NUM_CLASSES - 1), jnp.float32)
            for c in range(NUM_CLASSES - 2, -1, -1):               # first-max tie-break
                cidx = jnp.where(crows[c] >= cmax, float(c), cidx)
            dec = jnp.where(sub == b + 6, cidx, dec)

        out_ref[...] = dec                                         # one lane-dense store

    return kernel


def backbone_scale(x_nhwc, stride):
    # TODO(synk): Yolo_V3_Net is undefined in the reference and loads weights from
    # 'params/net.pt'; replaced by a deterministic strided average-pool feature
    # extractor so only the detection head + decode semantics are reproduced.
    N, H, W, C = x_nhwc.shape
    return x_nhwc.reshape(N, H // stride, stride, W // stride, stride, C).mean(axis=(2, 4))


def build_detector(N, H, W, Cin, anchors, case):
    """Builds a jitted dense forward: one fused pallas_call over all 3 scales."""
    assert H % 32 == 0 and W % 32 == 0
    geoms = []                                          # (key, stride, Hs, Ws, M)
    for key, stride in SCALES:
        Hs, Ws = H // stride, W // stride
        geoms.append((key, stride, Hs, Ws, N * Hs * Ws))

    TM = min(2048, _round_up(max(g[4] for g in geoms), 128))
    offs, m_pads, sids = [], [], []
    off = 0
    for si, (_, _, _, _, M) in enumerate(geoms):
        m_pad = _round_up(M, TM)
        offs.append(off)
        m_pads.append(m_pad)
        sids.extend([si] * (m_pad // TM))
        off += m_pad
    M_total, n_tiles = off, len(sids)
    sid_tbl = jnp.asarray(np.asarray(sids, np.int32))   # per-tile scale id (SMEM prefetch)

    # Exact per-cell grid indices (w_idx in row 0, h_idx in row 1), fused along M.
    idx_np = np.zeros((2, M_total), np.float32)
    for (key, stride, Hs, Ws, M), o in zip(geoms, offs):
        idx_np[0, o:o + M] = np.tile(np.arange(Ws, dtype=np.float32), N * Hs)
        idx_np[1, o:o + M] = np.tile(np.repeat(np.arange(Hs, dtype=np.float32), Ws), N)
    idx_all = jnp.asarray(idx_np)

    # Static per-scale decode constants (column 0 = bias, filled at runtime).
    cstat = np.zeros((len(geoms), SUB, 8), np.float32)
    for si, (key, stride, Hs, Ws, M) in enumerate(geoms):
        anc = np.asarray(anchors[key], np.float32)
        for a in range(NUM_ANCHORS):
            b = a * ATTRS
            cstat[si, b + 0, 1] = 1.0                    # pass raw p through
            cstat[si, b + 1, 1] = stride / case          # cx scale
            cstat[si, b + 2, 1] = stride / case          # cy scale
            cstat[si, b + 3, 2] = anc[a, 0] / case       # anchor_w / case
            cstat[si, b + 4, 2] = anc[a, 1] / case       # anchor_h / case
            cstat[si, b + 1, 3] = 1.0                    # mask_x
            cstat[si, b + 2, 4] = 1.0                    # mask_y
    cstat = jnp.asarray(cstat)

    grid_spec = pltpu.PrefetchScalarGridSpec(
        num_scalar_prefetch=1,
        grid=(n_tiles,),
        in_specs=[
            pl.BlockSpec((Cin, TM), lambda i, sid: (0, i)),                  # features
            pl.BlockSpec((2, TM), lambda i, sid: (0, i)),                    # (w_idx, h_idx)
            pl.BlockSpec((None, SUB, Cin), lambda i, sid: (sid[i], 0, 0)),   # head weights
            pl.BlockSpec((None, SUB, 8), lambda i, sid: (sid[i], 0, 0)),     # decode consts
        ],
        out_specs=pl.BlockSpec((SUB, TM), lambda i, sid: (0, i)),
    )
    head_call = pl.pallas_call(
        make_head_decode_kernel(TM),
        out_shape=jax.ShapeDtypeStruct((SUB, M_total), jnp.float32),
        grid_spec=grid_spec,
        compiler_params=pltpu.CompilerParams(
            dimension_semantics=("parallel",),
            vmem_limit_bytes=32 * 1024 * 1024),
    )

    @jax.jit
    def dense_fn(x_nchw, weights, biases):
        x = jnp.transpose(x_nchw, (0, 2, 3, 1))                      # NCHW -> NHWC
        feats = []
        for (key, stride, Hs, Ws, M), m_pad in zip(geoms, m_pads):
            f = backbone_scale(x, stride)                            # (N, Hs, Ws, Cin)
            fT = f.reshape(M, Cin).T                                 # (Cin, M) lane-dense
            feats.append(jnp.pad(fT, ((0, 0), (0, m_pad - M))))
        feat_all = jnp.concatenate(feats, axis=1).astype(jnp.bfloat16)

        w_list, c_list = [], []
        for si in range(len(geoms)):
            wp = jnp.zeros((SUB, Cin), jnp.float32).at[:COUT, :].set(weights[si].T)
            bp = jnp.zeros((SUB, 1), jnp.float32).at[:COUT, 0].set(biases[si])
            w_list.append(wp)
            c_list.append(jnp.concatenate([bp, cstat[si, :, 1:]], axis=1))
        w_all = jnp.stack(w_list).astype(jnp.bfloat16)               # (3, 32, Cin) bf16
        c_all = jnp.stack(c_list)                                    # (3, 32, 8)  f32

        return head_call(sid_tbl, feat_all, idx_all, w_all, c_all)   # (32, M_total)

    meta = dict(geoms=geoms, offs=offs, TM=TM, M_total=M_total, N=N)
    return dense_fn, meta


# Rows of the (32, M) kernel output holding [p, sig(p), cx, cy, w, h, cls] per anchor.
_ROW_GATHER = np.concatenate(
    [np.array([b, b + 5, b + 1, b + 2, b + 3, b + 4, b + 6])
     for b in (0, ATTRS, 2 * ATTRS)])


def split_dense(dense_np, meta):
    """(32, M_total) -> per-scale (N, Hs, Ws, 3, 7) arrays [p, sig, cx, cy, w, h, cls]."""
    N = meta["N"]
    outs = []
    for (key, stride, Hs, Ws, M), off in zip(meta["geoms"], meta["offs"]):
        d = dense_np[_ROW_GATHER, off:off + M]                       # (21, M) strided gather
        d7 = d.reshape(NUM_ANCHORS, 7, M).transpose(2, 0, 1)
        outs.append(d7.reshape(N, Hs, Ws, NUM_ANCHORS, 7))
    return outs


def detector_forward(dense_fn, meta, x_nchw, params, thresh):
    weights = [params[k][0] for k, _ in SCALES]
    biases = [params[k][1] for k, _ in SCALES]
    dense = jax.block_until_ready(dense_fn(x_nchw, weights, biases))
    d7_list = split_dense(np.asarray(dense), meta)
    boxes = []
    for d7 in d7_list:
        # TODO(synk): mask.nonzero() + output[mask] are dynamic-shape ops with no
        # fixed-shape Pallas equivalent; done on host in the same row-major
        # (n, h, w, anchor) order as torch.nonzero.
        mask = d7[..., 0] > thresh           # raw channel-0 value thresholded, as in the reference
        boxes.append(d7[..., 1:][mask])      # [sigmoid(p), cx, cy, w, h, cls]
    return np.concatenate(boxes, axis=0), d7_list


def reference_dense(feat_nhwc, weight, bias, t, case, anchors_scale):
    """Numpy reference matching the kernel numerics (bf16 matmul operands, f32 math)."""
    feat = np.asarray(jnp.asarray(feat_nhwc, jnp.bfloat16).astype(jnp.float32))
    wgt = np.asarray(jnp.asarray(weight, jnp.bfloat16).astype(jnp.float32))
    N, Hs, Ws, Cin = feat.shape
    y = feat.reshape(-1, Cin) @ wgt + np.asarray(bias, np.float32)
    y = y.reshape(N, Hs, Ws, NUM_ANCHORS, ATTRS)
    hh = np.broadcast_to(np.arange(Hs)[None, :, None, None], (N, Hs, Ws, NUM_ANCHORS))
    ww = np.broadcast_to(np.arange(Ws)[None, None, :, None], (N, Hs, Ws, NUM_ANCHORS))
    anc = np.asarray(anchors_scale, dtype=np.float32)
    p = y[..., 0]
    cx = (ww + y[..., 1]) * t / case
    cy = (hh + y[..., 2]) * t / case
    wb = anc[None, None, None, :, 0] * np.exp(y[..., 3]) / case
    hb = anc[None, None, None, :, 1] * np.exp(y[..., 4]) / case
    cls_logits = y[..., 5:]
    cls = np.argmax(cls_logits, axis=-1).astype(np.float32)
    srt = np.sort(cls_logits, axis=-1)
    gap = srt[..., -1] - srt[..., -2]                    # top-2 logit gap
    sig_p = 1.0 / (1.0 + np.exp(-p))
    dense7 = np.stack([p, sig_p, cx, cy, wb, hb, cls], axis=-1)
    return dense7, gap


if __name__ == "__main__":
    key = jax.random.PRNGKey(0)
    k_x, k_w13, k_b13, k_w26, k_b26, k_w52, k_b52 = jax.random.split(key, 7)

    # Small image consistent with the YOLOv3 stride structure (divisible by 32).
    N, Cin, H, W = 2, 8, 64, 64
    x = jax.random.normal(k_x, (N, Cin, H, W), dtype=jnp.float32)    # NCHW like PyTorch
    case = 64
    thresh = 0.05
    anchors = {
        13: [[116, 90], [156, 198], [373, 326]],
        26: [[30, 61], [62, 45], [59, 119]],
        52: [[10, 13], [16, 30], [33, 23]],
    }
    # Deterministic synthetic head weights (Cin -> 3*(5+num_classes)) per scale.
    params = {
        13: (0.3 * jax.random.normal(k_w13, (Cin, COUT), dtype=jnp.float32),
             0.1 * jax.random.normal(k_b13, (COUT,), dtype=jnp.float32)),
        26: (0.3 * jax.random.normal(k_w26, (Cin, COUT), dtype=jnp.float32),
             0.1 * jax.random.normal(k_b26, (COUT,), dtype=jnp.float32)),
        52: (0.3 * jax.random.normal(k_w52, (Cin, COUT), dtype=jnp.float32),
             0.1 * jax.random.normal(k_b52, (COUT,), dtype=jnp.float32)),
    }

    dense_fn, meta = build_detector(N, H, W, Cin, anchors, case)
    boxes, d7_list = detector_forward(dense_fn, meta, x, params, thresh)
    assert boxes.ndim == 2 and boxes.shape[1] == 6

    # Correctness check of the in-kernel compute against a numpy reference.
    x_nhwc = jnp.transpose(x, (0, 2, 3, 1))
    for (key_s, stride), d7 in zip(SCALES, d7_list):
        feat = backbone_scale(x_nhwc, stride)
        ref, gap = reference_dense(feat, params[key_s][0], params[key_s][1],
                                   stride, case, anchors[key_s])
        np.testing.assert_allclose(d7[..., :6], ref[..., :6], rtol=1e-3, atol=1e-3)
        mism = d7[..., 6] != ref[..., 6]
        assert not np.any(mism & (gap > 1e-3)), "class argmax mismatch"

    print("KERNEL_OK")
</pallas_src>

<mosaic_0001>
module attributes {stable_mosaic.version = 11 : i64} {
  func.func @kernel(%arg0: i32, %arg1: memref<3xi32, #tpu.memory_space<smem>>, %arg2: memref<8x128xbf16, #tpu.memory_space<vmem>>, %arg3: memref<2x128xf32, #tpu.memory_space<vmem>>, %arg4: memref<1x32x8xbf16, #tpu.memory_space<vmem>>, %arg5: memref<1x32x8xf32, #tpu.memory_space<vmem>>, %arg6: memref<32x128xf32, #tpu.memory_space<vmem>>) attributes {dimension_semantics = [#tpu.dimension_semantics<parallel>], iteration_bounds = array<i64: 3>, scalar_prefetch = 1 : i64, scratch_operands = 0 : i64, tpu.core_type = #tpu.core_type<tc>, window_params = [{transform_indices = @transform_0, window_bounds = array<i64: 8, 128>}, {transform_indices = @transform_1, window_bounds = array<i64: 2, 128>}, {transform_indices = @transform_2, window_bounds = array<i64: 1, 32, 8>}, {transform_indices = @transform_3, window_bounds = array<i64: 1, 32, 8>}, {transform_indices = @transform_4, window_bounds = array<i64: 32, 128>}]} {
    %c0 = arith.constant 0 : index
    %c0_0 = arith.constant 0 : index
    %c0_1 = arith.constant 0 : index
    %0 = vector.load %arg4[%c0, %c0_0, %c0_1] : memref<1x32x8xbf16, #tpu.memory_space<vmem>>, vector<1x32x8xbf16>
    %1 = vector.shape_cast %0 : vector<1x32x8xbf16> to vector<32x8xbf16>
    %c0_2 = arith.constant 0 : index
    %c0_3 = arith.constant 0 : index
    %2 = vector.load %arg2[%c0_2, %c0_3] : memref<8x128xbf16, #tpu.memory_space<vmem>>, vector<8x128xbf16>
    %cst = arith.constant dense<0.000000e+00> : vector<32x128xf32>
    %3 = tpu.matmul %1, %2, %cst {dimension_numbers = #tpu.dot_dimension_numbers<[1], [0], [0], [1], [0, 0, 1, 1], [], []>} : vector<32x8xbf16>, vector<8x128xbf16>, vector<32x128xf32> -> vector<32x128xf32>
    %c0_4 = arith.constant 0 : index
    %c0_5 = arith.constant 0 : index
    %c0_6 = arith.constant 0 : index
    %4 = vector.load %arg5[%c0_4, %c0_5, %c0_6] : memref<1x32x8xf32, #tpu.memory_space<vmem>>, vector<1x32x1xf32>
    %5 = vector.shape_cast %4 : vector<1x32x1xf32> to vector<32x1xf32>
    %c0_7 = arith.constant 0 : index
    %c0_8 = arith.constant 0 : index
    %c1 = arith.constant 1 : index
    %6 = vector.load %arg5[%c0_7, %c0_8, %c1] : memref<1x32x8xf32, #tpu.memory_space<vmem>>, vector<1x32x1xf32>
    %7 = vector.shape_cast %6 : vector<1x32x1xf32> to vector<32x1xf32>
    %c0_9 = arith.constant 0 : index
    %c0_10 = arith.constant 0 : index
    %c2 = arith.constant 2 : index
    %8 = vector.load %arg5[%c0_9, %c0_10, %c2] : memref<1x32x8xf32, #tpu.memory_space<vmem>>, vector<1x32x1xf32>
    %9 = vector.shape_cast %8 : vector<1x32x1xf32> to vector<32x1xf32>
    %c0_11 = arith.constant 0 : index
    %c0_12 = arith.constant 0 : index
    %c3 = arith.constant 3 : index
    %10 = vector.load %arg5[%c0_11, %c0_12, %c3] : memref<1x32x8xf32, #tpu.memory_space<vmem>>, vector<1x32x1xf32>
    %11 = vector.shape_cast %10 : vector<1x32x1xf32> to vector<32x1xf32>
    %c0_13 = arith.constant 0 : index
    %c0_14 = arith.constant 0 : index
    %c4 = arith.constant 4 : index
    %12 = vector.load %arg5[%c0_13, %c0_14, %c4] : memref<1x32x8xf32, #tpu.memory_space<vmem>>, vector<1x32x1xf32>
    %13 = vector.shape_cast %12 : vector<1x32x1xf32> to vector<32x1xf32>
    %14 = vector.broadcast %5 : vector<32x1xf32> to vector<32x128xf32>
    %15 = arith.addf %3, %14 : vector<32x128xf32>
    %c0_15 = arith.constant 0 : index
    %c0_16 = arith.constant 0 : index
    %16 = vector.load %arg3[%c0_15, %c0_16] : memref<2x128xf32, #tpu.memory_space<vmem>>, vector<1x128xf32>
    %c1_17 = arith.constant 1 : index
    %c0_18 = arith.constant 0 : index
    %17 = vector.load %arg3[%c1_17, %c0_18] : memref<2x128xf32, #tpu.memory_space<vmem>>, vector<1x128xf32>
    %18 = tpu.iota {dimensions = array<i32: 0>} : vector<32x1xi32>
    %c0_i32 = arith.constant 0 : i32
    %19 = vector.broadcast %c0_i32 : i32 to vector<32x1xi32>
    %20 = arith.cmpi slt, %18, %19 : vector<32x1xi32>
    %c0_i32_19 = arith.constant 0 : i32
    %21 = vector.broadcast %c0_i32_19 : i32 to vector<32x1xi32>
    %22 = arith.cmpi slt, %18, %21 : vector<32x1xi32>
    %c0_i32_20 = arith.constant 0 : i32
    %23 = vector.broadcast %c0_i32_20 : i32 to vector<32x1xi32>
    %24 = arith.cmpi eq, %18, %23 : vector<32x1xi32>
    %25 = arith.ori %20, %24 : vector<32x1xi1>
    %c3_i32 = arith.constant 3 : i32
    %26 = vector.broadcast %c3_i32 : i32 to vector<32x1xi32>
    %27 = arith.cmpi eq, %18, %26 : vector<32x1xi32>
    %28 = arith.ori %22, %27 : vector<32x1xi1>
    %c4_i32 = arith.constant 4 : i32
    %29 = vector.broadcast %c4_i32 : i32 to vector<32x1xi32>
    %30 = arith.cmpi eq, %18, %29 : vector<32x1xi32>
    %31 = arith.ori %28, %30 : vector<32x1xi1>
    %c9_i32 = arith.constant 9 : i32
    %32 = vector.broadcast %c9_i32 : i32 to vector<32x1xi32>
    %33 = arith.cmpi eq, %18, %32 : vector<32x1xi32>
    %34 = arith.ori %25, %33 : vector<32x1xi1>
    %c12_i32 = arith.constant 12 : i32
    %35 = vector.broadcast %c12_i32 : i32 to vector<32x1xi32>
    %36 = arith.cmpi eq, %18, %35 : vector<32x1xi32>
    %37 = arith.ori %31, %36 : vector<32x1xi1>
    %c13_i32 = arith.constant 13 : i32
    %38 = vector.broadcast %c13_i32 : i32 to vector<32x1xi32>
    %39 = arith.cmpi eq, %18, %38 : vector<32x1xi32>
    %40 = arith.ori %37, %39 : vector<32x1xi1>
    %c18_i32 = arith.constant 18 : i32
    %41 = vector.broadcast %c18_i32 : i32 to vector<32x1xi32>
    %42 = arith.cmpi eq, %18, %41 : vector<32x1xi32>
    %43 = arith.ori %34, %42 : vector<32x1xi1>
    %c21_i32 = arith.constant 21 : i32
    %44 = vector.broadcast %c21_i32 : i32 to vector<32x1xi32>
    %45 = arith.cmpi eq, %18, %44 : vector<32x1xi32>
    %46 = arith.ori %40, %45 : vector<32x1xi1>
    %c22_i32 = arith.constant 22 : i32
    %47 = vector.broadcast %c22_i32 : i32 to vector<32x1xi32>
    %48 = arith.cmpi eq, %18, %47 : vector<32x1xi32>
    %49 = arith.ori %46, %48 : vector<32x1xi1>
    %cst_21 = arith.constant 0.000000e+00 : f32
    %50 = vector.broadcast %cst_21 : f32 to vector<32x128xf32>
    %51 = arith.subf %50, %15 : vector<32x128xf32>
    %52 = vector.shape_cast %43 : vector<32x1xi1> to vector<32x1xi1>
    %53 = vector.broadcast %52 : vector<32x1xi1> to vector<32x128xi1>
    %54 = arith.select %53, %51, %15 : vector<32x128xi1>, vector<32x128xf32>
    %55 = math.exp %54 : vector<32x128xf32>
    %56 = vector.broadcast %16 : vector<1x128xf32> to vector<32x128xf32>
    %57 = vector.broadcast %11 : vector<32x1xf32> to vector<32x128xf32>
    %58 = arith.mulf %56, %57 : vector<32x128xf32>
    %59 = arith.addf %15, %58 : vector<32x128xf32>
    %60 = vector.broadcast %17 : vector<1x128xf32> to vector<32x128xf32>
    %61 = vector.broadcast %13 : vector<32x1xf32> to vector<32x128xf32>
    %62 = arith.mulf %60, %61 : vector<32x128xf32>
    %63 = arith.addf %59, %62 : vector<32x128xf32>
    %64 = vector.broadcast %7 : vector<32x1xf32> to vector<32x128xf32>
    %65 = arith.mulf %63, %64 : vector<32x128xf32>
    %66 = vector.broadcast %9 : vector<32x1xf32> to vector<32x128xf32>
    %67 = arith.mulf %55, %66 : vector<32x128xf32>
    %68 = vector.shape_cast %49 : vector<32x1xi1> to vector<32x1xi1>
    %69 = vector.broadcast %68 : vector<32x1xi1> to vector<32x128xi1>
    %70 = arith.select %69, %67, %65 : vector<32x128xi1>, vector<32x128xf32>
    %71 = vector.extract_strided_slice %55 {offsets = [0, 0], sizes = [1, 128], strides = [1, 1]} : vector<32x128xf32> to vector<1x128xf32>
    %cst_22 = arith.constant 1.000000e+00 : f32
    %72 = vector.broadcast %cst_22 : f32 to vector<1x128xf32>
    %73 = arith.addf %72, %71 : vector<1x128xf32>
    %cst_23 = arith.constant 1.000000e+00 : f32
    %74 = vector.broadcast %cst_23 : f32 to vector<1x128xf32>
    %75 = arith.divf %74, %73 : vector<1x128xf32>
    %c5_i32 = arith.constant 5 : i32
    %76 = vector.broadcast %c5_i32 : i32 to vector<32x1xi32>
    %77 = arith.cmpi eq, %18, %76 : vector<32x1xi32>
    %78 = vector.shape_cast %77 : vector<32x1xi1> to vector<32x1xi1>
    %79 = vector.broadcast %78 : vector<32x1xi1> to vector<32x128xi1>
    %80 = vector.shape_cast %75 : vector<1x128xf32> to vector<1x128xf32>
    %81 = vector.broadcast %80 : vector<1x128xf32> to vector<32x128xf32>
    %82 = arith.select %79, %81, %70 : vector<32x128xi1>, vector<32x128xf32>
    %83 = vector.extract_strided_slice %15 {offsets = [5, 0], sizes = [1, 128], strides = [1, 1]} : vector<32x128xf32> to vector<1x128xf32>
    %84 = vector.extract_strided_slice %15 {offsets = [6, 0], sizes = [1, 128], strides = [1, 1]} : vector<32x128xf32> to vector<1x128xf32>
    %85 = vector.extract_strided_slice %15 {offsets = [7, 0], sizes = [1, 128], strides = [1, 1]} : vector<32x128xf32> to vector<1x128xf32>
    %86 = vector.extract_strided_slice %15 {offsets = [8, 0], sizes = [1, 128], strides = [1, 1]} : vector<32x128xf32> to vector<1x128xf32>
    %87 = arith.maximumf %83, %84 : vector<1x128xf32>
    %88 = arith.maximumf %87, %85 : vector<1x128xf32>
    %89 = arith.maximumf %88, %86 : vector<1x128xf32>
    %cst_24 = arith.constant 3.000000e+00 : f32
    %90 = vector.broadcast %cst_24 : f32 to vector<1x128xf32>
    %91 = arith.cmpf oge, %85, %89 : vector<1x128xf32>
    %cst_25 = arith.constant 2.000000e+00 : f32
    %92 = vector.broadcast %cst_25 : f32 to vector<1x128xf32>
    %93 = arith.select %91, %92, %90 : vector<1x128xi1>, vector<1x128xf32>
    %94 = arith.cmpf oge, %84, %89 : vector<1x128xf32>
    %cst_26 = arith.constant 1.000000e+00 : f32
    %95 = vector.broadcast %cst_26 : f32 to vector<1x128xf32>
    %96 = arith.select %94, %95, %93 : vector<1x128xi1>, vector<1x128xf32>
    %97 = arith.cmpf oge, %83, %89 : vector<1x128xf32>
    %cst_27 = arith.constant 0.000000e+00 : f32
    %98 = vector.broadcast %cst_27 : f32 to vector<1x128xf32>
    %99 = arith.select %97, %98, %96 : vector<1x128xi1>, vector<1x128xf32>
    %c6_i32 = arith.constant 6 : i32
    %100 = vector.broadcast %c6_i32 : i32 to vector<32x1xi32>
    %101 = arith.cmpi eq, %18, %100 : vector<32x1xi32>
    %102 = vector.shape_cast %101 : vector<32x1xi1> to vector<32x1xi1>
    %103 = vector.broadcast %102 : vector<32x1xi1> to vector<32x128xi1>
    %104 = vector.shape_cast %99 : vector<1x128xf32> to vector<1x128xf32>
    %105 = vector.broadcast %104 : vector<1x128xf32> to vector<32x128xf32>
    %106 = arith.select %103, %105, %82 : vector<32x128xi1>, vector<32x128xf32>
    %107 = vector.extract_strided_slice %55 {offsets = [9, 0], sizes = [1, 128], strides = [1, 1]} : vector<32x128xf32> to vector<1x128xf32>
    %cst_28 = arith.constant 1.000000e+00 : f32
    %108 = vector.broadcast %cst_28 : f32 to vector<1x128xf32>
    %109 = arith.addf %108, %107 : vector<1x128xf32>
    %cst_29 = arith.constant 1.000000e+00 : f32
    %110 = vector.broadcast %cst_29 : f32 to vector<1x128xf32>
    %111 = arith.divf %110, %109 : vector<1x128xf32>
    %c14_i32 = arith.constant 14 : i32
    %112 = vector.broadcast %c14_i32 : i32 to vector<32x1xi32>
    %113 = arith.cmpi eq, %18, %112 : vector<32x1xi32>
    %114 = vector.shape_cast %113 : vector<32x1xi1> to vector<32x1xi1>
    %115 = vector.broadcast %114 : vector<32x1xi1> to vector<32x128xi1>
    %116 = vector.shape_cast %111 : vector<1x128xf32> to vector<1x128xf32>
    %117 = vector.broadcast %116 : vector<1x128xf32> to vector<32x128xf32>
    %118 = arith.select %115, %117, %106 : vector<32x128xi1>, vector<32x128xf32>
    %119 = vector.extract_strided_slice %15 {offsets = [14, 0], sizes = [1, 128], strides = [1, 1]} : vector<32x128xf32> to vector<1x128xf32>
    %120 = vector.extract_strided_slice %15 {offsets = [15, 0], sizes = [1, 128], strides = [1, 1]} : vector<32x128xf32> to vector<1x128xf32>
    %121 = vector.extract_strided_slice %15 {offsets = [16, 0], sizes = [1, 128], strides = [1, 1]} : vector<32x128xf32> to vector<1x128xf32>
    %122 = vector.extract_strided_slice %15 {offsets = [17, 0], sizes = [1, 128], strides = [1, 1]} : vector<32x128xf32> to vector<1x128xf32>
    %123 = arith.maximumf %119, %120 : vector<1x128xf32>
    %124 = arith.maximumf %123, %121 : vector<1x128xf32>
    %125 = arith.maximumf %124, %122 : vector<1x128xf32>
    %cst_30 = arith.constant 3.000000e+00 : f32
    %126 = vector.broadcast %cst_30 : f32 to vector<1x128xf32>
    %127 = arith.cmpf oge, %121, %125 : vector<1x128xf32>
    %cst_31 = arith.constant 2.000000e+00 : f32
    %128 = vector.broadcast %cst_31 : f32 to vector<1x128xf32>
    %129 = arith.select %127, %128, %126 : vector<1x128xi1>, vector<1x128xf32>
    %130 = arith.cmpf oge, %120, %125 : vector<1x128xf32>
    %cst_32 = arith.constant 1.000000e+00 : f32
    %131 = vector.broadcast %cst_32 : f32 to vector<1x128xf32>
    %132 = arith.select %130, %131, %129 : vector<1x128xi1>, vector<1x128xf32>
    %133 = arith.cmpf oge, %119, %125 : vector<1x128xf32>
    %cst_33 = arith.constant 0.000000e+00 : f32
    %134 = vector.broadcast %cst_33 : f32 to vector<1x128xf32>
    %135 = arith.select %133, %134, %132 : vector<1x128xi1>, vector<1x128xf32>
    %c15_i32 = arith.constant 15 : i32
    %136 = vector.broadcast %c15_i32 : i32 to vector<32x1xi32>
    %137 = arith.cmpi eq, %18, %136 : vector<32x1xi32>
    %138 = vector.shape_cast %137 : vector<32x1xi1> to vector<32x1xi1>
    %139 = vector.broadcast %138 : vector<32x1xi1> to vector<32x128xi1>
    %140 = vector.shape_cast %135 : vector<1x128xf32> to vector<1x128xf32>
    %141 = vector.broadcast %140 : vector<1x128xf32> to vector<32x128xf32>
    %142 = arith.select %139, %141, %118 : vector<32x128xi1>, vector<32x128xf32>
    %143 = vector.extract_strided_slice %55 {offsets = [18, 0], sizes = [1, 128], strides = [1, 1]} : vector<32x128xf32> to vector<1x128xf32>
    %cst_34 = arith.constant 1.000000e+00 : f32
    %144 = vector.broadcast %cst_34 : f32 to vector<1x128xf32>
    %145 = arith.addf %144, %143 : vector<1x128xf32>
    %cst_35 = arith.constant 1.000000e+00 : f32
    %146 = vector.broadcast %cst_35 : f32 to vector<1x128xf32>
    %147 = arith.divf %146, %145 : vector<1x128xf32>
    %c23_i32 = arith.constant 23 : i32
    %148 = vector.broadcast %c23_i32 : i32 to vector<32x1xi32>
    %149 = arith.cmpi eq, %18, %148 : vector<32x1xi32>
    %150 = vector.shape_cast %149 : vector<32x1xi1> to vector<32x1xi1>
    %151 = vector.broadcast %150 : vector<32x1xi1> to vector<32x128xi1>
    %152 = vector.shape_cast %147 : vector<1x128xf32> to vector<1x128xf32>
    %153 = vector.broadcast %152 : vector<1x128xf32> to vector<32x128xf32>
    %154 = arith.select %151, %153, %142 : vector<32x128xi1>, vector<32x128xf32>
    %155 = vector.extract_strided_slice %15 {offsets = [23, 0], sizes = [1, 128], strides = [1, 1]} : vector<32x128xf32> to vector<1x128xf32>
    %156 = vector.extract_strided_slice %15 {offsets = [24, 0], sizes = [1, 128], strides = [1, 1]} : vector<32x128xf32> to vector<1x128xf32>
    %157 = vector.extract_strided_slice %15 {offsets = [25, 0], sizes = [1, 128], strides = [1, 1]} : vector<32x128xf32> to vector<1x128xf32>
    %158 = vector.extract_strided_slice %15 {offsets = [26, 0], sizes = [1, 128], strides = [1, 1]} : vector<32x128xf32> to vector<1x128xf32>
    %159 = arith.maximumf %155, %156 : vector<1x128xf32>
    %160 = arith.maximumf %159, %157 : vector<1x128xf32>
    %161 = arith.maximumf %160, %158 : vector<1x128xf32>
    %cst_36 = arith.constant 3.000000e+00 : f32
    %162 = vector.broadcast %cst_36 : f32 to vector<1x128xf32>
    %163 = arith.cmpf oge, %157, %161 : vector<1x128xf32>
    %cst_37 = arith.constant 2.000000e+00 : f32
    %164 = vector.broadcast %cst_37 : f32 to vector<1x128xf32>
    %165 = arith.select %163, %164, %162 : vector<1x128xi1>, vector<1x128xf32>
    %166 = arith.cmpf oge, %156, %161 : vector<1x128xf32>
    %cst_38 = arith.constant 1.000000e+00 : f32
    %167 = vector.broadcast %cst_38 : f32 to vector<1x128xf32>
    %168 = arith.select %166, %167, %165 : vector<1x128xi1>, vector<1x128xf32>
    %169 = arith.cmpf oge, %155, %161 : vector<1x128xf32>
    %cst_39 = arith.constant 0.000000e+00 : f32
    %170 = vector.broadcast %cst_39 : f32 to vector<1x128xf32>
    %171 = arith.select %169, %170, %168 : vector<1x128xi1>, vector<1x128xf32>
    %c24_i32 = arith.constant 24 : i32
    %172 = vector.broadcast %c24_i32 : i32 to vector<32x1xi32>
    %173 = arith.cmpi eq, %18, %172 : vector<32x1xi32>
    %174 = vector.shape_cast %173 : vector<32x1xi1> to vector<32x1xi1>
    %175 = vector.broadcast %174 : vector<32x1xi1> to vector<32x128xi1>
    %176 = vector.shape_cast %171 : vector<1x128xf32> to vector<1x128xf32>
    %177 = vector.broadcast %176 : vector<1x128xf32> to vector<32x128xf32>
    %178 = arith.select %175, %177, %154 : vector<32x128xi1>, vector<32x128xf32>
    %c0_40 = arith.constant 0 : index
    %c0_41 = arith.constant 0 : index
    %179 = vector.load %arg6[%c0_40, %c0_41] : memref<32x128xf32, #tpu.memory_space<vmem>>, vector<32x128xf32>
    tpu.vector_store %arg6[%c0_40, %c0_41], %178 {strides = array<i32>} : memref<32x128xf32, #tpu.memory_space<vmem>>, vector<32x128xf32>,
    return
  }
  func.func @transform_0(%arg0: i32, %arg1: memref<3xi32, #tpu.memory_space<smem>>) -> (i32, i32) {
    %c0_i32 = arith.constant 0 : i32
    %c0_i32_0 = arith.constant 0 : i32
    return %c0_i32, %arg0 : i32, i32
  }
  func.func @transform_1(%arg0: i32, %arg1: memref<3xi32, #tpu.memory_space<smem>>) -> (i32, i32) {
    %c0_i32 = arith.constant 0 : i32
    %c0_i32_0 = arith.constant 0 : i32
    return %c0_i32, %arg0 : i32, i32
  }
  func.func @transform_2(%arg0: i32, %arg1: memref<3xi32, #tpu.memory_space<smem>>) -> (i32, i32, i32) {
    %0 = arith.index_cast %arg0 : i32 to index
    %1 = memref.load %arg1[%0] : memref<3xi32, #tpu.memory_space<smem>>
    %c0_i32 = arith.constant 0 : i32
    %c0_i32_0 = arith.constant 0 : i32
    %c0_i32_1 = arith.constant 0 : i32
    return %1, %c0_i32, %c0_i32_0 : i32, i32, i32
  }
  func.func @transform_3(%arg0: i32, %arg1: memref<3xi32, #tpu.memory_space<smem>>) -> (i32, i32, i32) {
    %0 = arith.index_cast %arg0 : i32 to index
    %1 = memref.load %arg1[%0] : memref<3xi32, #tpu.memory_space<smem>>
    %c0_i32 = arith.constant 0 : i32
    %c0_i32_0 = arith.constant 0 : i32
    %c0_i32_1 = arith.constant 0 : i32
    return %1, %c0_i32, %c0_i32_0 : i32, i32, i32
  }
  func.func @transform_4(%arg0: i32, %arg1: memref<3xi32, #tpu.memory_space<smem>>) -> (i32, i32) {
    %c0_i32 = arith.constant 0 : i32
    %c0_i32_0 = arith.constant 0 : i32
    return %c0_i32, %arg0 : i32, i32
  }
}

</mosaic_0001>

<llo_original>
// kernel: dense_fn.1
$region0: #{dense_fn.1}
  #allocation0 [shape = 'u32[]', space=smem, size = 0x4, offset = 0x4, fixed_abs, tag = 'smem constant byte address 0x4 - core index']
  #allocation1 [shape = 'u32[144,128]{1,0:T(1,128)}', space=vmem, size = 0x12000, scoped, tag = 'internal scratch']
  #allocation2 [shape = 's32[1]{0}', space=sflag, size = 0x4, scoped, tag = 'scoped memory for dense_fn.1']
  #allocation3 [shape = 'u8[512]{0}', space=smem, size = 0x200, scoped, tag = 'prefetched SMEM operand 0']
  %s0 = inlined_call_operand.vmem [shape: s32[3], index: 0, kind: input, shape index: {}]
  %s1 = inlined_call_operand.vmem [shape: bf16[8,384], index: 1, kind: input, shape index: {}]
  %s2 = inlined_call_operand.vmem [shape: f32[2,384], index: 2, kind: input, shape index: {}]
  %s3 = inlined_call_operand.vmem [shape: bf16[3,32,8], index: 3, kind: input, shape index: {}]
  %s4 = inlined_call_operand.vmem [shape: f32[3,32,8], index: 4, kind: input, shape index: {}]
  %s5 = inlined_call_operand.hbm [shape: f32[32,384], index: 5, kind: output, shape index: {}]
  %s6 = sld [smem:[#allocation0]]
  $region49: #{dense_fn.1} parent=0
    _
  %s8 = ssub.s32 1, %s6
  %s9 = scalar_select 0, %s8, %s6
  %s10 = sshll.u32 %s0, 4
  %s11 = int_to_ptr.vmem [resolvable:$true] %s10
  %13 = dma.vmem_to_smem %s11, 16, [#allocation3], [#allocation2]
  %14 = dma.done [#allocation2], 16
  %15 = sfence
  $region1: #{dense_fn.1} parent=0
    #allocation4 [shape = 'u8[32768]{0}', space=vmem, size = 0x8000, scoped, tag = 'output window, operand 0']
    #allocation5 [shape = 's32[2]{0}', space=sflag, size = 0x8, scoped, tag = 'scoped memory for dense_fn.1']
    %16 = vsyncpa [#allocation5], 0
    %s17 = scalar_lea.sflag [#allocation5], 1
    %18 = vsyncpa %s17, 0
    loop: start=0, step=1, limit=5
    $region2: #{dense_fn.1} parent=1 // loop_pre_header
      _
    $region3: #{dense_fn.1} parent=1 // loop_header
      %s20 = sphi 0, %s24
      %p21 = scmp.ge.s32.totalorder %s20, 5
      %s30 = sphi 0, %s32
      %s33 = sphi 0, %s30
      %s34 = sphi 0, %s33
      %s50 = sphi 0, %s34
      %s56 = sphi 0, %s58
      %s59 = sphi 0, %s56
      %s60 = sphi 0, %s59
      %s76 = sphi 0, %s60
      %s84 = sphi 0, %s86
      %s87 = sphi 0, %s84
      %s88 = sphi 0, %s87
      %s104 = sphi 0, %s88
      %s112 = sphi 0, %s114
      %s115 = sphi 0, %s112
      %s116 = sphi 0, %s115
      %s132 = sphi 0, %s116
      %s138 = sphi 0, %s140
      %s141 = sphi 0, %s138
      %s142 = sphi 0, %s141
      %s158 = sphi 0, %s142
    $region4: #{dense_fn.1} parent=1 // loop_header_branch
      %23 = sbr.rel (%p21) target = $region8
    $region5: #{dense_fn.1} parent=1 // loop_body
      %s25 = ssub.s32 %s20, 1
      %s26 = ssub.s32 %s20, 2
      %s27 = sadd.s32 %s20, 1
      %s28 = ssub.s32 %s20, %s27
      %p29 = scmp.eq.s32.totalorder %s28, 0
      %s31 = sadd.s32 %s30, 1
      %s32 = scalar_select %p29, %s30, %s31
      %p35 = pneg %p29
      %p36 = scmp.eq.s32.totalorder %s20, 2
      %p37 = por %p35, %p36
      %p38 = scmp.ne.s32.totalorder %s30, %s33
      %p39 = scmp.eq.s32.totalorder %s20, 0
      %p40 = por %p38, %p39
      %p41 = scmp.ne.s32.totalorder %s30, %s33
      %p42 = scmp.eq.s32.totalorder %s25, 2
      %p43 = por %p41, %p42
      %p44 = scmp.ne.s32.totalorder %s33, %s34
      %p45 = scmp.eq.s32.totalorder %s25, 0
      %p46 = por %p44, %p45
      %p47 = scmp.ne.s32.totalorder %s33, %s34
      %p48 = scmp.eq.s32.totalorder %s26, 2
      %p49 = por %p47, %p48
      %p51 = scmp.ne.s32.totalorder %s34, %s50
      %p52 = scmp.eq.s32.totalorder %s26, 0
      %p53 = por %p51, %p52
      %s54 = ssub.s32 %s20, %s27
      %p55 = scmp.eq.s32.totalorder %s54, 0
      %s57 = sadd.s32 %s56, 1
      %s58 = scalar_select %p55, %s56, %s57
      %p61 = pneg %p55
      %p62 = scmp.eq.s32.totalorder %s20, 2
      %p63 = por %p61, %p62
      %p64 = scmp.ne.s32.totalorder %s56, %s59
      %p65 = scmp.eq.s32.totalorder %s20, 0
      %p66 = por %p64, %p65
      %p67 = scmp.ne.s32.totalorder %s56, %s59
      %p68 = scmp.eq.s32.totalorder %s25, 2
      %p69 = por %p67, %p68
      %p70 = scmp.ne.s32.totalorder %s59, %s60
      %p71 = scmp.eq.s32.totalorder %s25, 0
      %p72 = por %p70, %p71
      %p73 = scmp.ne.s32.totalorder %s59, %s60
      %p74 = scmp.eq.s32.totalorder %s26, 2
      %p75 = por %p73, %p74
      %p77 = scmp.ne.s32.totalorder %s60, %s76
      %p78 = scmp.eq.s32.totalorder %s26, 0
      %p79 = por %p77, %p78
      %s80 = sld [smem:[#allocation3 + %s20]]
      %s81 = sld [smem:[#allocation3 + %s27]]
      %s82 = ssub.s32 %s80, %s81
      %p83 = scmp.eq.s32.totalorder %s82, 0
      %s85 = sadd.s32 %s84, 1
      %s86 = scalar_select %p83, %s84, %s85
      %p89 = pneg %p83
      %p90 = scmp.eq.s32.totalorder %s20, 2
      %p91 = por %p89, %p90
      %p92 = scmp.ne.s32.totalorder %s84, %s87
      %p93 = scmp.eq.s32.totalorder %s20, 0
      %p94 = por %p92, %p93
      %p95 = scmp.ne.s32.totalorder %s84, %s87
      %p96 = scmp.eq.s32.totalorder %s25, 2
      %p97 = por %p95, %p96
      %p98 = scmp.ne.s32.totalorder %s87, %s88
      %p99 = scmp.eq.s32.totalorder %s25, 0
      %p100 = por %p98, %p99
      %p101 = scmp.ne.s32.totalorder %s87, %s88
      %p102 = scmp.eq.s32.totalorder %s26, 2
      %p103 = por %p101, %p102
      %p105 = scmp.ne.s32.totalorder %s88, %s104
      %p106 = scmp.eq.s32.totalorder %s26, 0
      %p107 = por %p105, %p106
      %s108 = sld [smem:[#allocation3 + %s20]]
      %s109 = sld [smem:[#allocation3 + %s27]]
      %s110 = ssub.s32 %s108, %s109
      %p111 = scmp.eq.s32.totalorder %s110, 0
      %s113 = sadd.s32 %s112, 1
      %s114 = scalar_select %p111, %s112, %s113
      %p117 = pneg %p111
      %p118 = scmp.eq.s32.totalorder %s20, 2
      %p119 = por %p117, %p118
      %p120 = scmp.ne.s32.totalorder %s112, %s115
      %p121 = scmp.eq.s32.totalorder %s20, 0
      %p122 = por %p120, %p121
      %p123 = scmp.ne.s32.totalorder %s112, %s115
      %p124 = scmp.eq.s32.totalorder %s25, 2
      %p125 = por %p123, %p124
      %p126 = scmp.ne.s32.totalorder %s115, %s116
      %p127 = scmp.eq.s32.totalorder %s25, 0
      %p128 = por %p126, %p127
      %p129 = scmp.ne.s32.totalorder %s115, %s116
      %p130 = scmp.eq.s32.totalorder %s26, 2
      %p131 = por %p129, %p130
      %p133 = scmp.ne.s32.totalorder %s116, %s132
      %p134 = scmp.eq.s32.totalorder %s26, 0
      %p135 = por %p133, %p134
      %s136 = ssub.s32 %s20, %s27
      %p137 = scmp.eq.s32.totalorder %s136, 0
      %s139 = sadd.s32 %s138, 1
      %s140 = scalar_select %p137, %s138, %s139
      %p143 = pneg %p137
      %p144 = scmp.eq.s32.totalorder %s20, 2
      %p145 = por %p143, %p144
      %p146 = scmp.ne.s32.totalorder %s138, %s141
      %p147 = scmp.eq.s32.totalorder %s20, 0
      %p148 = por %p146, %p147
      %p149 = scmp.ne.s32.totalorder %s138, %s141
      %p150 = scmp.eq.s32.totalorder %s25, 2
      %p151 = por %p149, %p150
      %p152 = scmp.ne.s32.totalorder %s141, %s142
      %p153 = scmp.eq.s32.totalorder %s25, 0
      %p154 = por %p152, %p153
      %p155 = scmp.ne.s32.totalorder %s141, %s142
      %p156 = scmp.eq.s32.totalorder %s26, 2
      %p157 = por %p155, %p156
      %p159 = scmp.ne.s32.totalorder %s142, %s158
      %p160 = scmp.eq.s32.totalorder %s26, 0
      %p161 = por %p159, %p160
      %p162 = scmp.le.s32.totalorder 1, %s20
      %p163 = scmp.lt.s32.totalorder %s20, 4
      %p164 = pnand %p162, %p163
      %p165 = pneg %p164
      // Predicated region
      $region9: #{dense_fn.1} parent=5 // pred_check
        _
      $region10: #{dense_fn.1} parent=5 // pred_check_branch
        %167 = sbr.rel (%p164) target = $region12
      $region11: #{dense_fn.1} parent=5 // pred_region
        %s168 = ssub.s32 %s20, 1
      $region12: #{dense_fn.1} parent=5 // pred_fallthru
        _
      %p169 = scmp.lt.s32.totalorder %s20, 3
      // Predicated region
      $region13: #{dense_fn.1} parent=5 // pred_check
        %p170 = pneg %p169
      $region14: #{dense_fn.1} parent=5 // pred_check_branch
        %172 = sbr.rel (%p170) target = $region16
      $region15: #{dense_fn.1} parent=5 // pred_region
        // Predicated region
        $region17: #{dense_fn.1} parent=15 // pred_check
          %p173 = pneg %p40
        $region18: #{dense_fn.1} parent=15 // pred_check_branch
          %175 = sbr.rel (%p173) target = $region20
        $region19: #{dense_fn.1} parent=15 // pred_region
          %p176 = scmp.lt.s32.totalorder %s20, 2
          %s177 = scalar_select %p176, %s20, 2
          %s178 = smul.addr %s177, 4
          %s179 = scalar_lea.vmem %s1, %s178
        $region20: #{dense_fn.1} parent=15 // pred_fallthru
          _
        // Predicated region
        $region21: #{dense_fn.1} parent=15 // pred_check
          %p180 = pneg %p66
        $region22: #{dense_fn.1} parent=15 // pred_check_branch
          %182 = sbr.rel (%p180) target = $region24
        $region23: #{dense_fn.1} parent=15 // pred_region
          %p183 = scmp.lt.s32.totalorder %s20, 2
          %s184 = scalar_select %p183, %s20, 2
          %s185 = smul.addr %s184, 2
          %s186 = scalar_lea.vmem %s2, %s185
        $region24: #{dense_fn.1} parent=15 // pred_fallthru
          _
        // Predicated region
        $region25: #{dense_fn.1} parent=15 // pred_check
          %p187 = pneg %p94
        $region26: #{dense_fn.1} parent=15 // pred_check_branch
          %189 = sbr.rel (%p187) target = $region28
        $region27: #{dense_fn.1} parent=15 // pred_region
          %s190 = sld [smem:[#allocation3 + %s20]]
          %p191 = scmp.lt.s32.totalorder %s190, 2
          %s192 = scalar_select %p191, %s190, 2
          %s193 = smul.addr %s192, 4
          %s194 = smul.addr %s193, 4
          %s195 = scalar_lea.vmem %s3, %s194
          %s196 = sld [smem:[#allocation3 + %s20]]
        $region28: #{dense_fn.1} parent=15 // pred_fallthru
          _
        // Predicated region
        $region29: #{dense_fn.1} parent=15 // pred_check
          %p197 = pneg %p122
        $region30: #{dense_fn.1} parent=15 // pred_check_branch
          %199 = sbr.rel (%p197) target = $region32
        $region31: #{dense_fn.1} parent=15 // pred_region
          %s200 = sld [smem:[#allocation3 + %s20]]
          %p201 = scmp.lt.s32.totalorder %s200, 2
          %s202 = scalar_select %p201, %s200, 2
          %s203 = smul.addr %s202, 4
          %s204 = smul.addr %s203, 8
          %s205 = scalar_lea.vmem %s4, %s204
          %s206 = sld [smem:[#allocation3 + %s20]]
        $region32: #{dense_fn.1} parent=15 // pred_fallthru
          _
      $region16: #{dense_fn.1} parent=5 // pred_fallthru
        _
      %p207 = scmp.le.s32.totalorder 1, %s20
      %p208 = scmp.lt.s32.totalorder %s20, 4
      %p209 = pnand %p207, %p208
      %p210 = pneg %p209
      // Predicated region
      $region33: #{dense_fn.1} parent=5 // pred_check
        _
      $region34: #{dense_fn.1} parent=5 // pred_check_branch
        %212 = sbr.rel (%p209) target = $region36
      $region35: #{dense_fn.1} parent=5 // pred_region
        %s213 = ssub.s32 %s20, 1
        %p214 = scmp.lt.s32.totalorder %s25, 2
        %s215 = scalar_select %p214, %s25, 2
        %s216 = smul.addr %s215, 4
        %s217 = scalar_lea.vmem %s1, %s216
        %p218 = pneg %p46
        %p219 = pneg %p43
        %p220 = scmp.lt.s32.totalorder %s25, 2
        %s221 = scalar_select %p220, %s25, 2
        %s222 = smul.addr %s221, 2
        %s223 = scalar_lea.vmem %s2, %s222
        %p224 = pneg %p72
        %p225 = pneg %p69
        %s226 = sld [smem:[#allocation3 + %s25]]
        %p227 = scmp.lt.s32.totalorder %s226, 2
        %s228 = scalar_select %p227, %s226, 2
        %s229 = smul.addr %s228, 4
        %s230 = smul.addr %s229, 4
        %s231 = scalar_lea.vmem %s3, %s230
        %p232 = pneg %p100
        %p233 = pneg %p97
        %s234 = sld [smem:[#allocation3 + %s25]]
        %p235 = scmp.lt.s32.totalorder %s234, 2
        %s236 = scalar_select %p235, %s234, 2
        %s237 = smul.addr %s236, 4
        %s238 = smul.addr %s237, 8
        %s239 = scalar_lea.vmem %s4, %s238
        %p240 = pneg %p128
        %p241 = pneg %p125
        %p242 = pneg %p154
        %p243 = pneg %p151
        %s244 = sand.u32 %s141, 1
        %s245 = scalar_lea.sflag [#allocation5], %s244
        %s246 = sand.u32 %s141, 1
        %s247 = smul.addr %s246, 32
        %s248 = scalar_lea.vmem [#allocation4], %s247
        %p249 = scmp.lt.s32.totalorder %s25, 2
        %s250 = scalar_select %p249, %s25, 2
        %s251 = smul.addr %s250, 4
        %s252 = scalar_lea.vmem %s1, %s251
        %p253 = scmp.lt.s32.totalorder %s25, 2
        %s254 = scalar_select %p253, %s25, 2
        %s255 = smul.addr %s254, 2
        %s256 = scalar_lea.vmem %s2, %s255
        %s257 = sld [smem:[#allocation3 + %s25]]
        %p258 = scmp.lt.s32.totalorder %s257, 2
        %s259 = scalar_select %p258, %s257, 2
        %s260 = smul.addr %s259, 4
        %s261 = smul.addr %s260, 4
        %s262 = scalar_lea.vmem %s3, %s261
        %s263 = sld [smem:[#allocation3 + %s25]]
        %s264 = sld [smem:[#allocation3 + %s25]]
        %p265 = scmp.lt.s32.totalorder %s264, 2
        %s266 = scalar_select %p265, %s264, 2
        %s267 = smul.addr %s266, 4
        %s268 = smul.addr %s267, 8
        %s269 = scalar_lea.vmem %s4, %s268
        %s270 = sld [smem:[#allocation3 + %s25]]
        %v272 = vld [vmem:[%s262] sm:$0xf]
        %v273 = vld [vmem:[%s262 + $0x4] sm:$0xf]
        %v274 = vld [vmem:[%s262 + $0x8] sm:$0xf]
        %v275 = vld [vmem:[%s262 + $0xc] sm:$0xf]
        %v276 = vld [vmem:[%s252] sm:$0xf]
        %v277 = vld [vmem:[%s269] sm:$0xff]
        %v278 = vld [vmem:[%s269 + $0x8] sm:$0xff]
        %v279 = vld [vmem:[%s269 + $0x10] sm:$0xff]
        %v280 = vld [vmem:[%s269 + $0x18] sm:$0xff]
        %282 = vset.pattern.permute.xlu0 0
        %283 = vperm.xlu0 %282, %v277
        %v284 = vpop.permute.xlu0 %283
        %287 = vset.pattern.permute.xlu0 0
        %288 = vperm.xlu0 %287, %v278
        %v289 = vpop.permute.xlu0 %288
        %292 = vset.pattern.permute.xlu0 0
        %293 = vperm.xlu0 %292, %v279
        %v294 = vpop.permute.xlu0 %293
        %297 = vset.pattern.permute.xlu0 0
        %298 = vperm.xlu0 %297, %v280
        %v299 = vpop.permute.xlu0 %298
        %v305 = vunpack.c.l.b16 %v272
        %v306 = vunpack.c.l.b16 %v273
        %v307 = vunpack.c.l.b16 %v274
        %v308 = vunpack.c.l.b16 %v275
        %v309 = vpack.c.b16 %v306, %v305
        %v310 = vpack.c.b16 %v308, %v307
        %vm311 = vcmask 64512
        %v313 = vsel %vm311, %v309, 0
        %v316 = vsel %vm311, %v310, 0
        %vm318 = vcmask 1043456
        %v320 = vsel %vm318, %v276, 0
        %322 = vmatprep.subr.bf16.mxu0 0
        %323 = vmatpush1.bf16.msra.mxu0 %v320
        %324 = vmatprep.subr.bf16.mxu0 0
        %325 = vmatpush1.bf16.msra.mxu0 0
        %326 = vmatprep.subr.bf16.mxu0 0
        %327 = vmatpush1.bf16.msra.mxu0 0
        %328 = vmatprep.subr.bf16.mxu0 0
        %329 = vmatpush1.bf16.msra.mxu0 0
        %330 = vmatprep.subr.bf16.mxu0 0
        %331 = vmatpush1.bf16.msra.mxu0 0
        %332 = vmatprep.subr.bf16.mxu0 0
        %333 = vmatpush1.bf16.msra.mxu0 0
        %334 = vmatprep.subr.bf16.mxu0 0
        %335 = vmatpush1.bf16.msra.mxu0 0
        %336 = vmatprep.subr.bf16.mxu0 0
        %337 = vmatpush1.bf16.msra.mxu0 0
        %338 = vmatprep.subr.bf16.mxu0 0
        %339 = vmatpush1.bf16.msra.mxu0 0
        %340 = vmatprep.subr.bf16.mxu0 0
        %341 = vmatpush1.bf16.msra.mxu0 0
        %342 = vmatprep.subr.bf16.mxu0 0
        %343 = vmatpush1.bf16.msra.mxu0 0
        %344 = vmatprep.subr.bf16.mxu0 0
        %345 = vmatpush1.bf16.msra.mxu0 0
        %346 = vmatprep.subr.bf16.mxu0 0
        %347 = vmatpush1.bf16.msra.mxu0 0
        %348 = vmatprep.subr.bf16.mxu0 0
        %349 = vmatpush1.bf16.msra.mxu0 0
        %350 = vmatprep.subr.bf16.mxu0 0
        %351 = vmatpush1.bf16.msra.mxu0 0
        %352 = vmatprep.subr.bf16.mxu0 0
        %353 = vmatpush1.bf16.msra.mxu0 0
        %354 = vmatprep.mubr.bf16.mxu0 0
        %355 = vmatmul.mubr.bf16.gmra.mrb[0].mxu0 %v313
        %v356 = vpop.f32.mrb[0].mxu0
        %v357 = vadd.f32 %v284, %v356
        %v358 = vpop.f32.mrb[0].mxu0
        %v359 = vpop.f32.mrb[0].mxu0
        %v360 = vadd.f32 %v289, %v359
        %v361 = vpop.f32.mrb[0].mxu0
        %362 = vmatprep.mubr.bf16.mxu0 0
        %363 = vmatmul.mubr.bf16.gmra.mrb[0].mxu0 %v316
        %v364 = vpop.f32.mrb[0].mxu0
        %v365 = vadd.f32 %v294, %v364
        %v366 = vpop.f32.mrb[0].mxu0
        %v367 = vpop.f32.mrb[0].mxu0
        %v368 = vadd.f32 %v299, %v367
        %v369 = vpop.f32.mrb[0].mxu0
        %370 = vdwg.mxu0
        %v371 = vld [vmem:[%s256] sm:$0x1]
        %v372 = vld [vmem:[%s256 + $0x1] sm:$0x1]
        %v373 = vlaneseq
        %v374 = vshrl.u32 %v373, 7
        %v375 = vadd.s32 %v374, 8
        %v376 = vadd.s32 %v374, 16
        %v377 = vadd.s32 %v374, 24
        %vm378 = vcmp.lt.s32.totalorder %v374, 0
        %vm379 = vcmp.lt.s32.totalorder %v375, 0
        %vm380 = vcmp.lt.s32.totalorder %v376, 0
        %vm381 = vcmp.lt.s32.totalorder %v377, 0
        %vm382 = vcmp.eq.s32.totalorder %v374, 0
        %vm383 = vcmp.eq.s32.totalorder %v375, 0
        %vm384 = vcmp.eq.s32.totalorder %v376, 0
        %vm385 = vcmp.eq.s32.totalorder %v377, 0
        %vm386 = vmor %vm378, %vm382
        %vm387 = vmor %vm379, %vm383
        %vm388 = vmor %vm380, %vm384
        %vm389 = vmor %vm381, %vm385
        %vm390 = vcmp.eq.s32.totalorder %v374, 3
        %vm391 = vcmp.eq.s32.totalorder %v375, 3
        %vm392 = vcmp.eq.s32.totalorder %v376, 3
        %vm393 = vcmp.eq.s32.totalorder %v377, 3
        %vm394 = vmor %vm378, %vm390
        %vm395 = vmor %vm379, %vm391
        %vm396 = vmor %vm380, %vm392
        %vm397 = vmor %vm381, %vm393
        %vm398 = vcmp.eq.s32.totalorder %v374, 4
        %vm399 = vcmp.eq.s32.totalorder %v375, 4
        %vm400 = vcmp.eq.s32.totalorder %v376, 4
        %vm401 = vcmp.eq.s32.totalorder %v377, 4
        %vm402 = vmor %vm394, %vm398
        %vm403 = vmor %vm395, %vm399
        %vm404 = vmor %vm396, %vm400
        %vm405 = vmor %vm397, %vm401
        %vm406 = vcmp.eq.s32.totalorder %v374, 9
        %vm407 = vcmp.eq.s32.totalorder %v375, 9
        %vm408 = vcmp.eq.s32.totalorder %v376, 9
        %vm409 = vcmp.eq.s32.totalorder %v377, 9
        %vm410 = vmor %vm386, %vm406
        %vm411 = vmor %vm387, %vm407
        %vm412 = vmor %vm388, %vm408
        %vm413 = vmor %vm389, %vm409
        %vm414 = vcmp.eq.s32.totalorder %v374, 12
        %vm415 = vcmp.eq.s32.totalorder %v375, 12
        %vm416 = vcmp.eq.s32.totalorder %v376, 12
        %vm417 = vcmp.eq.s32.totalorder %v377, 12
        %vm418 = vmor %vm402, %vm414
        %vm419 = vmor %vm403, %vm415
        %vm420 = vmor %vm404, %vm416
        %vm421 = vmor %vm405, %vm417
        %vm422 = vcmp.eq.s32.totalorder %v374, 13
        %vm423 = vcmp.eq.s32.totalorder %v375, 13
        %vm424 = vcmp.eq.s32.totalorder %v376, 13
        %vm425 = vcmp.eq.s32.totalorder %v377, 13
        %vm426 = vmor %vm418, %vm422
        %vm427 = vmor %vm419, %vm423
        %vm428 = vmor %vm420, %vm424
        %vm429 = vmor %vm421, %vm425
        %vm430 = vcmp.eq.s32.totalorder %v374, 18
        %vm431 = vcmp.eq.s32.totalorder %v375, 18
        %vm432 = vcmp.eq.s32.totalorder %v376, 18
        %vm433 = vcmp.eq.s32.totalorder %v377, 18
        %vm434 = vmor %vm410, %vm430
        %vm435 = vmor %vm411, %vm431
        %vm436 = vmor %vm412, %vm432
        %vm437 = vmor %vm413, %vm433
        %vm438 = vcmp.eq.s32.totalorder %v374, 21
        %vm439 = vcmp.eq.s32.totalorder %v375, 21
        %vm440 = vcmp.eq.s32.totalorder %v376, 21
        %vm441 = vcmp.eq.s32.totalorder %v377, 21
        %vm442 = vmor %vm426, %vm438
        %vm443 = vmor %vm427, %vm439
        %vm444 = vmor %vm428, %vm440
        %vm445 = vmor %vm429, %vm441
        %vm446 = vcmp.eq.s32.totalorder %v374, 22
        %vm447 = vcmp.eq.s32.totalorder %v375, 22
        %vm448 = vcmp.eq.s32.totalorder %v376, 22
        %vm449 = vcmp.eq.s32.totalorder %v377, 22
        %vm450 = vmor %vm442, %vm446
        %vm451 = vmor %vm443, %vm447
        %vm452 = vmor %vm444, %vm448
        %vm453 = vmor %vm445, %vm449
        %v454 = vsub.f32 0.0, %v357
        %v455 = vsub.f32 0.0, %v360
        %v456 = vsub.f32 0.0, %v365
        %v457 = vsub.f32 0.0, %v368
        %v458 = vsel %vm434, 1, 0
        %v459 = vsel %vm435, 1, 0
        %v460 = vsel %vm436, 1, 0
        %v461 = vsel %vm437, 1, 0
        %vm462 = vcmp.eq.s32.totalorder %v458, 1
        %vm463 = vcmp.eq.s32.totalorder %v459, 1
        %vm464 = vcmp.eq.s32.totalorder %v460, 1
        %vm465 = vcmp.eq.s32.totalorder %v461, 1
        %v466 = vsel %vm462, %v454, %v357
        %v467 = vsel %vm463, %v455, %v360
        %v468 = vsel %vm464, %v456, %v365
        %v469 = vsel %vm465, %v457, %v368
        %v470 = vmul.f32 %v466, 1.442695
        %v471 = vpow.pop %v470
        %v472 = vmul.f32 %v467, 1.442695
        %v473 = vpow.pop %v472
        %v474 = vmul.f32 %v468, 1.442695
        %v475 = vpow.pop %v474
        %v476 = vmul.f32 %v469, 1.442695
        %v477 = vpow.pop %v476
        %v478 = vlaneseq
        %v479 = vshrl.u32 %v478, 7
        %v480 = vsub.s32 0, %v479
        %v481 = vrot.slane %v371, %v480
        %482 = vset.pattern.permute.xlu0 3
        %483 = vperm.xlu0 %482, %v277
        %v484 = vpop.permute.xlu0 %483
        %486 = vset.pattern.permute.xlu0 3
        %487 = vperm.xlu0 %486, %v278
        %v488 = vpop.permute.xlu0 %487
        %490 = vset.pattern.permute.xlu0 3
        %491 = vperm.xlu0 %490, %v279
        %v492 = vpop.permute.xlu0 %491
        %494 = vset.pattern.permute.xlu0 3
        %495 = vperm.xlu0 %494, %v280
        %v496 = vpop.permute.xlu0 %495
        %v498 = vmul.f32 %v481, %v484
        %v499 = vmul.f32 %v481, %v488
        %v500 = vmul.f32 %v481, %v492
        %v501 = vmul.f32 %v481, %v496
        %v502 = vadd.f32 %v357, %v498
        %v503 = vadd.f32 %v360, %v499
        %v504 = vadd.f32 %v365, %v500
        %v505 = vadd.f32 %v368, %v501
        %v506 = vlaneseq
        %v507 = vshrl.u32 %v506, 7
        %v508 = vsub.s32 0, %v507
        %v509 = vrot.slane %v372, %v508
        %510 = vset.pattern.permute.xlu0 4
        %511 = vperm.xlu0 %510, %v277
        %v512 = vpop.permute.xlu0 %511
        %514 = vset.pattern.permute.xlu0 4
        %515 = vperm.xlu0 %514, %v278
        %v516 = vpop.permute.xlu0 %515
        %518 = vset.pattern.permute.xlu0 4
        %519 = vperm.xlu0 %518, %v279
        %v520 = vpop.permute.xlu0 %519
        %522 = vset.pattern.permute.xlu0 4
        %523 = vperm.xlu0 %522, %v280
        %v524 = vpop.permute.xlu0 %523
        %v526 = vmul.f32 %v509, %v512
        %v527 = vmul.f32 %v509, %v516
        %v528 = vmul.f32 %v509, %v520
        %v529 = vmul.f32 %v509, %v524
        %v530 = vadd.f32 %v502, %v526
        %v531 = vadd.f32 %v503, %v527
        %v532 = vadd.f32 %v504, %v528
        %v533 = vadd.f32 %v505, %v529
        %534 = vset.pattern.permute.xlu0 1
        %535 = vperm.xlu0 %534, %v277
        %v536 = vpop.permute.xlu0 %535
        %538 = vset.pattern.permute.xlu0 1
        %539 = vperm.xlu0 %538, %v278
        %v540 = vpop.permute.xlu0 %539
        %542 = vset.pattern.permute.xlu0 1
        %543 = vperm.xlu0 %542, %v279
        %v544 = vpop.permute.xlu0 %543
        %546 = vset.pattern.permute.xlu0 1
        %547 = vperm.xlu0 %546, %v280
        %v548 = vpop.permute.xlu0 %547
        %v550 = vmul.f32 %v530, %v536
        %v551 = vmul.f32 %v531, %v540
        %v552 = vmul.f32 %v532, %v544
        %v553 = vmul.f32 %v533, %v548
        %554 = vset.pattern.permute.xlu0 2
        %555 = vperm.xlu0 %554, %v277
        %v556 = vpop.permute.xlu0 %555
        %558 = vset.pattern.permute.xlu0 2
        %559 = vperm.xlu0 %558, %v278
        %v560 = vpop.permute.xlu0 %559
        %562 = vset.pattern.permute.xlu0 2
        %563 = vperm.xlu0 %562, %v279
        %v564 = vpop.permute.xlu0 %563
        %566 = vset.pattern.permute.xlu0 2
        %567 = vperm.xlu0 %566, %v280
        %v568 = vpop.permute.xlu0 %567
        %v570 = vmul.f32 %v471, %v556
        %v571 = vmul.f32 %v473, %v560
        %v572 = vmul.f32 %v475, %v564
        %v573 = vmul.f32 %v477, %v568
        %v574 = vsel %vm450, 1, 0
        %v575 = vsel %vm451, 1, 0
        %v576 = vsel %vm452, 1, 0
        %v577 = vsel %vm453, 1, 0
        %vm578 = vcmp.eq.s32.totalorder %v574, 1
        %vm579 = vcmp.eq.s32.totalorder %v575, 1
        %vm580 = vcmp.eq.s32.totalorder %v576, 1
        %vm581 = vcmp.eq.s32.totalorder %v577, 1
        %v582 = vsel %vm578, %v570, %v550
        %v583 = vsel %vm579, %v571, %v551
        %v584 = vsel %vm580, %v572, %v552
        %v585 = vsel %vm581, %v573, %v553
        %v586 = vadd.f32 %v471, 1.0
        %v587 = vrcp.pop %v586
        %v588 = vmul.f32 1.0, %v587
        %vm589 = vcmp.eq.s32.totalorder %v374, 5
        %vm590 = vcmp.eq.s32.totalorder %v375, 5
        %vm591 = vcmp.eq.s32.totalorder %v376, 5
        %vm592 = vcmp.eq.s32.totalorder %v377, 5
        %v593 = vsel %vm589, 1, 0
        %v594 = vsel %vm590, 1, 0
        %v595 = vsel %vm591, 1, 0
        %v596 = vsel %vm592, 1, 0
        %vm597 = vcmp.eq.s32.totalorder %v593, 1
        %vm598 = vcmp.eq.s32.totalorder %v594, 1
        %vm599 = vcmp.eq.s32.totalorder %v595, 1
        %vm600 = vcmp.eq.s32.totalorder %v596, 1
        %v601 = vlaneseq
        %v602 = vshrl.u32 %v601, 7
        %v603 = vsub.s32 0, %v602
        %v604 = vrot.slane %v588, %v603
        %v605 = vsel %vm597, %v604, %v582
        %v606 = vsel %vm598, %v604, %v583
        %v607 = vsel %vm599, %v604, %v584
        %v608 = vsel %vm600, %v604, %v585
        %v610 = vrot.slane %v357, 1
        %v612 = vmax.f32 %v357, %v610
        %v613 = vrot.slane %v357, 2
        %v615 = vmax.f32 %v612, %v613
        %v617 = vrot.slane %v360, 3
        %v619 = vmax.f32 %v615, %v617
        %v621 = vrot.slane %v619, 6
        %vm623 = vcmp.ge.f32.partialorder %v357, %v621
        %v624 = vsel %vm623, 2.0, 3.0
        %v625 = vrot.slane %v619, 7
        %vm627 = vcmp.ge.f32.partialorder %v357, %v625
        %v629 = vrot.slane %v624, 1
        %v631 = vsel %vm627, 1.0, %v629
        %vm632 = vcmp.ge.f32.partialorder %v357, %v619
        %v634 = vrot.slane %v631, 1
        %v636 = vsel %vm632, 0.0, %v634
        %vm637 = vcmp.eq.s32.totalorder %v374, 6
        %vm638 = vcmp.eq.s32.totalorder %v375, 6
        %vm639 = vcmp.eq.s32.totalorder %v376, 6
        %vm640 = vcmp.eq.s32.totalorder %v377, 6
        %v641 = vsel %vm637, 1, 0
        %v642 = vsel %vm638, 1, 0
        %v643 = vsel %vm639, 1, 0
        %v644 = vsel %vm640, 1, 0
        %vm645 = vcmp.eq.s32.totalorder %v641, 1
        %vm646 = vcmp.eq.s32.totalorder %v642, 1
        %vm647 = vcmp.eq.s32.totalorder %v643, 1
        %vm648 = vcmp.eq.s32.totalorder %v644, 1
        %v649 = vlaneseq
        %v650 = vshrl.u32 %v649, 7
        %v651 = vsub.s32 5, %v650
        %v652 = vrot.slane %v636, %v651
        %v653 = vsel %vm645, %v652, %v605
        %v654 = vsel %vm646, %v652, %v606
        %v655 = vsel %vm647, %v652, %v607
        %v656 = vsel %vm648, %v652, %v608
        %v657 = vadd.f32 %v473, 1.0
        %v658 = vrcp.pop %v657
        %v659 = vmul.f32 1.0, %v658
        %vm660 = vcmp.eq.s32.totalorder %v374, 14
        %vm661 = vcmp.eq.s32.totalorder %v375, 14
        %vm662 = vcmp.eq.s32.totalorder %v376, 14
        %vm663 = vcmp.eq.s32.totalorder %v377, 14
        %v664 = vsel %vm660, 1, 0
        %v665 = vsel %vm661, 1, 0
        %v666 = vsel %vm662, 1, 0
        %v667 = vsel %vm663, 1, 0
        %vm668 = vcmp.eq.s32.totalorder %v664, 1
        %vm669 = vcmp.eq.s32.totalorder %v665, 1
        %vm670 = vcmp.eq.s32.totalorder %v666, 1
        %vm671 = vcmp.eq.s32.totalorder %v667, 1
        %v672 = vlaneseq
        %v673 = vshrl.u32 %v672, 7
        %v674 = vsub.s32 1, %v673
        %v675 = vrot.slane %v659, %v674
        %v676 = vsel %vm668, %v675, %v653
        %v677 = vsel %vm669, %v675, %v654
        %v678 = vsel %vm670, %v675, %v655
        %v679 = vsel %vm671, %v675, %v656
        %v680 = vrot.slane %v360, 1
        %v682 = vmax.f32 %v360, %v680
        %v684 = vrot.slane %v365, 2
        %v686 = vmax.f32 %v682, %v684
        %v687 = vrot.slane %v365, 3
        %v689 = vmax.f32 %v686, %v687
        %v691 = vrot.slane %v689, 6
        %vm693 = vcmp.ge.f32.partialorder %v365, %v691
        %v694 = vsel %vm693, 2.0, 3.0
        %v695 = vrot.slane %v689, 7
        %vm697 = vcmp.ge.f32.partialorder %v360, %v695
        %v699 = vrot.slane %v694, 1
        %v701 = vsel %vm697, 1.0, %v699
        %vm702 = vcmp.ge.f32.partialorder %v360, %v689
        %v704 = vrot.slane %v701, 1
        %v706 = vsel %vm702, 0.0, %v704
        %vm707 = vcmp.eq.s32.totalorder %v374, 15
        %vm708 = vcmp.eq.s32.totalorder %v375, 15
        %vm709 = vcmp.eq.s32.totalorder %v376, 15
        %vm710 = vcmp.eq.s32.totalorder %v377, 15
        %v711 = vsel %vm707, 1, 0
        %v712 = vsel %vm708, 1, 0
        %v713 = vsel %vm709, 1, 0
        %v714 = vsel %vm710, 1, 0
        %vm715 = vcmp.eq.s32.totalorder %v711, 1
        %vm716 = vcmp.eq.s32.totalorder %v712, 1
        %vm717 = vcmp.eq.s32.totalorder %v713, 1
        %vm718 = vcmp.eq.s32.totalorder %v714, 1
        %v719 = vlaneseq
        %v720 = vshrl.u32 %v719, 7
        %v721 = vsub.s32 6, %v720
        %v722 = vrot.slane %v706, %v721
        %v723 = vsel %vm715, %v722, %v676
        %v724 = vsel %vm716, %v722, %v677
        %v725 = vsel %vm717, %v722, %v678
        %v726 = vsel %vm718, %v722, %v679
        %v727 = vadd.f32 %v475, 1.0
        %v728 = vrcp.pop %v727
        %v729 = vmul.f32 1.0, %v728
        %vm730 = vcmp.eq.s32.totalorder %v374, 23
        %vm731 = vcmp.eq.s32.totalorder %v375, 23
        %vm732 = vcmp.eq.s32.totalorder %v376, 23
        %vm733 = vcmp.eq.s32.totalorder %v377, 23
        %v734 = vsel %vm730, 1, 0
        %v735 = vsel %vm731, 1, 0
        %v736 = vsel %vm732, 1, 0
        %v737 = vsel %vm733, 1, 0
        %vm738 = vcmp.eq.s32.totalorder %v734, 1
        %vm739 = vcmp.eq.s32.totalorder %v735, 1
        %vm740 = vcmp.eq.s32.totalorder %v736, 1
        %vm741 = vcmp.eq.s32.totalorder %v737, 1
        %v742 = vlaneseq
        %v743 = vshrl.u32 %v742, 7
        %v744 = vsub.s32 2, %v743
        %v745 = vrot.slane %v729, %v744
        %v746 = vsel %vm738, %v745, %v723
        %v747 = vsel %vm739, %v745, %v724
        %v748 = vsel %vm740, %v745, %v725
        %v749 = vsel %vm741, %v745, %v726
        %v751 = vrot.slane %v368, 1
        %v753 = vmax.f32 %v365, %v751
        %v754 = vrot.slane %v368, 2
        %v756 = vmax.f32 %v753, %v754
        %v757 = vrot.slane %v368, 3
        %v759 = vmax.f32 %v756, %v757
        %v761 = vrot.slane %v759, 6
        %vm763 = vcmp.ge.f32.partialorder %v368, %v761
        %v764 = vsel %vm763, 2.0, 3.0
        %v765 = vrot.slane %v759, 7
        %vm767 = vcmp.ge.f32.partialorder %v368, %v765
        %v769 = vrot.slane %v764, 1
        %v771 = vsel %vm767, 1.0, %v769
        %vm772 = vcmp.ge.f32.partialorder %v365, %v759
        %v774 = vrot.slane %v771, 1
        %v776 = vsel %vm772, 0.0, %v774
        %vm777 = vcmp.eq.s32.totalorder %v374, 24
        %vm778 = vcmp.eq.s32.totalorder %v375, 24
        %vm779 = vcmp.eq.s32.totalorder %v376, 24
        %vm780 = vcmp.eq.s32.totalorder %v377, 24
        %v781 = vsel %vm777, 1, 0
        %v782 = vsel %vm778, 1, 0
        %v783 = vsel %vm779, 1, 0
        %v784 = vsel %vm780, 1, 0
        %vm785 = vcmp.eq.s32.totalorder %v781, 1
        %vm786 = vcmp.eq.s32.totalorder %v782, 1
        %vm787 = vcmp.eq.s32.totalorder %v783, 1
        %vm788 = vcmp.eq.s32.totalorder %v784, 1
        %v789 = vlaneseq
        %v790 = vshrl.u32 %v789, 7
        %v791 = vsub.s32 7, %v790
        %v792 = vrot.slane %v776, %v791
        %v793 = vsel %vm785, %v792, %v746
        %v794 = vsel %vm786, %v792, %v747
        %v795 = vsel %vm787, %v792, %v748
        %v796 = vsel %vm788, %v792, %v749
        %797 = vst [vmem:[%s248] sm:$0xff] %v793
        %798 = vst [vmem:[%s248 + $0x8] sm:$0xff] %v794
        %799 = vst [vmem:[%s248 + $0x10] sm:$0xff] %v795
        %800 = vst [vmem:[%s248 + $0x18] sm:$0xff] %v796
        %s801 = sand.u32 %s141, 1
        %s802 = scalar_lea.sflag [#allocation5], %s801
        %s803 = sand.u32 %s141, 1
        %s804 = smul.addr %s803, 32
        %s805 = scalar_lea.vmem [#allocation4], %s804
        // Predicated region
        $region37: #{dense_fn.1} parent=35 // pred_check
          %p806 = pneg %p151
        $region38: #{dense_fn.1} parent=35 // pred_check_branch
          %808 = sbr.rel (%p806) target = $region40
        $region39: #{dense_fn.1} parent=35 // pred_region
          %s810 = ssub.s32 512, 512
          %811 = vsyncadd %s802, %s810
          %s812 = smul.addr %s25, 128
          %s813 = scalar_lea.hbm %s5, %s812
          %s814 = sshll.u32 %s805, 4
          %s815 = int_to_ptr.vmem [resolvable:$true] %s814
          %820 = dma.vmem_to_hbm [thread:$0]  %s815, 512, %s813, %s802, 128, 384, 8
        $region40: #{dense_fn.1} parent=35 // pred_fallthru
          _
      $region36: #{dense_fn.1} parent=5 // pred_fallthru
        _
      %p821 = scmp.le.s32.totalorder 2, %s20
      // Predicated region
      $region41: #{dense_fn.1} parent=5 // pred_check
        %p822 = pneg %p821
      $region42: #{dense_fn.1} parent=5 // pred_check_branch
        %824 = sbr.rel (%p822) target = $region44
      $region43: #{dense_fn.1} parent=5 // pred_region
        %s825 = ssub.s32 %s20, 2
        // Predicated region
        $region45: #{dense_fn.1} parent=43 // pred_check
          %p826 = pneg %p157
        $region46: #{dense_fn.1} parent=43 // pred_check_branch
          %828 = sbr.rel (%p826) target = $region48
        $region47: #{dense_fn.1} parent=43 // pred_region
          %s829 = sand.u32 %s142, 1
          %s830 = scalar_lea.sflag [#allocation5], %s829
          %s831 = sand.u32 %s142, 1
          %s832 = smul.addr %s831, 32
          %s833 = scalar_lea.vmem [#allocation4], %s832
          %834 = dma.done %s830, 512
        $region48: #{dense_fn.1} parent=43 // pred_fallthru
          _
      $region44: #{dense_fn.1} parent=5 // pred_fallthru
        _
    $region6: #{dense_fn.1} parent=1 // loop_footer
      %s24 = sadd.s32 1, %s20
    $region7: #{dense_fn.1} parent=1 // loop_footer_branch
      %19 = sbr.rel target = $region3
    $region8: #{dense_fn.1} parent=1 // loop_exit
      _
    %835 = vsyncpa [#allocation5], 1
    %s836 = scalar_lea.sflag [#allocation5], 1
    %837 = vsyncpa %s836, 1

</llo_original>
